<compile_context>
chip_gen: v6e
topology: v6e:2x2x1
jax: 0.10.0
libtpu: 0.0.40
codegen_flags: <defaults>
</compile_context>

<pallas_src>
import functools

import jax
import jax.numpy as jnp
from jax.experimental import pallas as pl
from jax.experimental.pallas import tpu as pltpu

EPS = 1e-5
LANE = 128
SUBLANE = 8


def _round_up(n, m):
    return (n + m - 1) // m * m


def _emotion_kernel(x_ref, w1_ref, gamma_ref, beta_ref, w2_ref, b2_ref,
                    o_ref, sum_ref, sq_ref, scale_ref, shift_ref,
                    stash_ref=None, *, batch, tile_b, use_stash):
    phase = pl.program_id(0)          # 0: BN statistics pass, 1: apply pass
    tile = pl.program_id(1)
    n_tiles = pl.num_programs(1)

    @pl.when(phase == 0)
    def _stats_pass():
        @pl.when(tile == 0)
        def _init():
            sum_ref[...] = jnp.zeros_like(sum_ref)
            sq_ref[...] = jnp.zeros_like(sq_ref)
            # Out block index stays at 0 for the whole stats sweep; make its
            # contents deterministic (it is rewritten with real data in phase 1).
            o_ref[...] = jnp.zeros_like(o_ref)

        # Linear(input_dim -> hidden) WITHOUT bias: the bias cancels exactly
        # under training-mode BatchNorm. bf16 operands, f32 MXU accumulation.
        h = jnp.dot(x_ref[...].astype(jnp.bfloat16), w1_ref[...],
                    preferred_element_type=jnp.float32)          # [TB, Hp] f32

        if use_stash:
            stash_ref[tile] = h.astype(jnp.bfloat16)

        @pl.when(tile < n_tiles - 1)
        def _full_tile():                    # no batch-padding rows possible here
            sum_ref[...] += jnp.sum(h, axis=0, keepdims=True)
            sq_ref[...] += jnp.sum(h * h, axis=0, keepdims=True)

        @pl.when(tile == n_tiles - 1)
        def _last_tile_and_finalize():
            # Only the last (ragged) tile can contain padding rows; mask them.
            row = jax.lax.broadcasted_iota(jnp.int32, (tile_b, 1), 0) + tile * tile_b
            hm = jnp.where(row < batch, h, 0.0)
            sum_ref[...] += jnp.sum(hm, axis=0, keepdims=True)
            sq_ref[...] += jnp.sum(hm * hm, axis=0, keepdims=True)

            inv_n = jnp.float32(1.0 / batch)
            mean = sum_ref[...] * inv_n
            var = jnp.maximum(sq_ref[...] * inv_n - mean * mean, 0.0)
            scale = gamma_ref[...] * jax.lax.rsqrt(var + EPS)
            scale_ref[...] = scale
            shift_ref[...] = beta_ref[...] - mean * scale

    @pl.when(phase == 1)
    def _apply_pass():
        if use_stash:
            h = stash_ref[tile].astype(jnp.float32)
        else:
            h = jnp.dot(x_ref[...].astype(jnp.bfloat16), w1_ref[...],
                        preferred_element_type=jnp.float32)
        # Fused BatchNorm (single scale/shift) + ReLU in f32.
        hn = jnp.maximum(h * scale_ref[...] + shift_ref[...], 0.0)
        # Linear(hidden -> output_dim) + bias + ReLU; bf16 store (lane-dense).
        out = jnp.dot(hn.astype(jnp.bfloat16), w2_ref[...],
                      preferred_element_type=jnp.float32)
        o_ref[...] = jnp.maximum(out + b2_ref[...], 0.0).astype(o_ref.dtype)


def prepare_params(params):
    """One-time weight prep: transpose to [in,out], pad to lane multiples, cast."""
    hidden, in_dim = params["w1"].shape
    out_dim = params["w2"].shape[0]
    kp = _round_up(in_dim, LANE)
    hp = _round_up(hidden, LANE)
    op = _round_up(out_dim, LANE)
    w1 = jnp.zeros((kp, hp), jnp.bfloat16).at[:in_dim, :hidden].set(
        params["w1"].T.astype(jnp.bfloat16))
    w2 = jnp.zeros((hp, op), jnp.bfloat16).at[:hidden, :out_dim].set(
        params["w2"].T.astype(jnp.bfloat16))
    gamma = jnp.zeros((1, hp), jnp.float32).at[:, :hidden].set(params["gamma"])
    beta = jnp.zeros((1, hp), jnp.float32).at[:, :hidden].set(params["beta"])
    b2 = jnp.zeros((1, op), jnp.float32).at[:, :out_dim].set(params["b2"])
    # NOTE: params["b1"] is intentionally not used by the kernel — a Linear bias
    # followed by training-mode BatchNorm has no effect on the forward output.
    return dict(w1=w1, gamma=gamma, beta=beta, w2=w2, b2=b2,
                in_dim=in_dim, hidden=hidden, out_dim=out_dim,
                kp=kp, hp=hp, op=op)


def emotion_classifier(x, prepped, *, tile_b=4096, stash=True,
                       vmem_limit_bytes=None):
    """Forward pass. x: [B, input_dim] f32. Returns [B, output_dim] f32."""
    B, in_dim = x.shape
    assert in_dim == prepped["in_dim"]
    kp, hp, op = prepped["kp"], prepped["hp"], prepped["op"]

    # Feature padding only needed when input_dim is not lane-aligned (256 is).
    if kp != in_dim:
        x = jnp.pad(x, ((0, 0), (0, kp - in_dim)))

    tb = min(_round_up(tile_b, SUBLANE), _round_up(B, SUBLANE))
    n_tiles = pl.cdiv(B, tb)

    # Generation-aware VMEM budget (v5e/v6e: 128 MiB, v7x: 64 MiB physical).
    try:
        vmem_cap = pltpu.get_tpu_info().vmem_capacity_bytes
    except Exception:
        vmem_cap = 64 * 1024 * 1024       # conservative fallback
    if vmem_limit_bytes is None:
        vmem_limit_bytes = min(int(vmem_cap * 0.75), 110 * 1024 * 1024)

    # Double-buffered x/out blocks + resident weight blocks + slack.
    pipeline_bytes = (2 * (tb * kp * 4 + tb * op * 2)
                      + 2 * 2 * (kp * hp + hp * op) + (1 << 20))
    stash_bytes = n_tiles * tb * hp * 2
    use_stash = bool(stash) and (pipeline_bytes + stash_bytes <= vmem_limit_bytes)

    kernel = functools.partial(_emotion_kernel, batch=B, tile_b=tb,
                               use_stash=use_stash)

    if use_stash:
        # Phase 1 reads h from the VMEM stash; pin the x block index so no
        # redundant x DMA is issued during the apply sweep.
        x_map = lambda p, i, nt=n_tiles: ((1 - p) * i + p * (nt - 1), 0)
    else:
        x_map = lambda p, i: (i, 0)

    scratch = [pltpu.VMEM((1, hp), jnp.float32)] * 4
    if use_stash:
        scratch = scratch + [pltpu.VMEM((n_tiles, tb, hp), jnp.bfloat16)]

    out = pl.pallas_call(
        kernel,
        out_shape=jax.ShapeDtypeStruct((B, op), jnp.bfloat16),
        grid_spec=pltpu.PrefetchScalarGridSpec(
            num_scalar_prefetch=0,
            grid=(2, n_tiles),                               # (phase, batch tile)
            in_specs=[
                pl.BlockSpec((tb, kp), x_map),                 # x tile (f32, pipelined)
                pl.BlockSpec((kp, hp), lambda p, i: (0, 0)),   # w1 (resident)
                pl.BlockSpec((1, hp), lambda p, i: (0, 0)),    # gamma
                pl.BlockSpec((1, hp), lambda p, i: (0, 0)),    # beta
                pl.BlockSpec((hp, op), lambda p, i: (0, 0)),   # w2 (resident)
                pl.BlockSpec((1, op), lambda p, i: (0, 0)),    # b2
            ],
            # Phase 0 keeps the output block index at 0 (only zero-initialized);
            # phase 1 walks the batch tiles.
            out_specs=pl.BlockSpec((tb, op), lambda p, i: (p * i, 0)),
            scratch_shapes=scratch,
        ),
        compiler_params=pltpu.CompilerParams(
            # Phase 1 depends on phase-0 scratch and the stats pass is a
            # cross-tile reduction, so both axes stay sequential.
            dimension_semantics=("arbitrary", "arbitrary"),
            vmem_limit_bytes=vmem_limit_bytes,
        ),
    )(x, prepped["w1"], prepped["gamma"], prepped["beta"],
      prepped["w2"], prepped["b2"])

    return out[:, :prepped["out_dim"]].astype(jnp.float32)


def init_params(key, input_dim=256, hidden=120, output_dim=8):
    k1, k2, k3, k4, k5, k6 = jax.random.split(key, 6)
    bound1 = 1.0 / (input_dim ** 0.5)
    bound2 = 1.0 / (hidden ** 0.5)
    return {
        "w1": jax.random.uniform(k1, (hidden, input_dim), jnp.float32, -bound1, bound1),
        "b1": jax.random.uniform(k2, (hidden,), jnp.float32, -bound1, bound1),
        "gamma": 1.0 + 0.1 * jax.random.normal(k3, (hidden,), jnp.float32),
        "beta": 0.1 * jax.random.normal(k4, (hidden,), jnp.float32),
        "w2": jax.random.uniform(k5, (output_dim, hidden), jnp.float32, -bound2, bound2),
        "b2": jax.random.uniform(k6, (output_dim,), jnp.float32, -bound2, bound2),
    }


def _reference_mirror(x, params, *, stash_round):
    """Mirrors the kernel numerics (bf16 matmul operands, f32 elsewhere)."""
    xb = x.astype(jnp.bfloat16)
    w1 = params["w1"].T.astype(jnp.bfloat16)
    h = jnp.dot(xb, w1, preferred_element_type=jnp.float32)  # b1 cancels under BN
    mean = jnp.mean(h, axis=0, keepdims=True)
    var = jnp.maximum(jnp.mean(h * h, axis=0, keepdims=True) - mean * mean, 0.0)
    scale = params["gamma"][None, :] * jax.lax.rsqrt(var + EPS)
    shift = params["beta"][None, :] - mean * scale
    if stash_round:                      # kernel stashes h in bf16 when it fits
        h = h.astype(jnp.bfloat16).astype(jnp.float32)
    hn = jnp.maximum(h * scale + shift, 0.0)
    w2 = params["w2"].T.astype(jnp.bfloat16)
    out = jnp.dot(hn.astype(jnp.bfloat16), w2,
                  preferred_element_type=jnp.float32) + params["b2"][None, :]
    out = jnp.maximum(out, 0.0)
    return out.astype(jnp.bfloat16).astype(jnp.float32)      # kernel stores bf16


def _reference_torch_f32(x, params):
    """PyTorch-faithful f32 forward (training-mode BatchNorm1d, biased var)."""
    h = x @ params["w1"].T + params["b1"]
    mean = jnp.mean(h, axis=0)
    var = jnp.mean((h - mean) ** 2, axis=0)
    hn = jnp.maximum((h - mean) * params["gamma"] / jnp.sqrt(var + EPS)
                     + params["beta"], 0.0)
    out = hn @ params["w2"].T + params["b2"]
    return jnp.maximum(out, 0.0)


if __name__ == "__main__":
    key = jax.random.PRNGKey(0)
    kx, kw = jax.random.split(key)
    B, input_dim, hidden, output_dim = 200, 256, 120, 8

    x = jax.random.normal(kx, (B, input_dim), jnp.float32)
    params = init_params(kw, input_dim=input_dim, hidden=hidden,
                         output_dim=output_dim)
    prepped = prepare_params(params)

    # Small tile -> multiple batch tiles + a ragged last tile; VMEM h-stash path.
    out_stash = jax.block_until_ready(emotion_classifier(x, prepped, tile_b=64))
    # Recompute (no-stash) fallback path.
    out_recomp = jax.block_until_ready(
        emotion_classifier(x, prepped, tile_b=64, stash=False))
    # Default tile (single tile covering the whole small batch).
    out_default = jax.block_until_ready(emotion_classifier(x, prepped))

    assert out_stash.shape == (B, output_dim)
    assert out_recomp.shape == (B, output_dim)
    assert out_default.shape == (B, output_dim)

    ref_stash = _reference_mirror(x, params, stash_round=True)
    ref_recomp = _reference_mirror(x, params, stash_round=False)
    ref_f32 = _reference_torch_f32(x, params)

    checks = (
        ("stash", out_stash, ref_stash, 5e-3),
        ("recompute", out_recomp, ref_recomp, 5e-3),
        ("default", out_default, ref_stash, 5e-3),
        ("stash_vs_f32_torch", out_stash, ref_f32, 1e-1),   # bf16 pipeline vs f32
    )
    for name, got, ref, tol in checks:
        err = float(jnp.max(jnp.abs(got - ref)))
        assert jnp.allclose(got, ref, atol=tol, rtol=tol), \
            f"{name}: mismatch vs reference (max abs err {err})"

    print("KERNEL_OK")
</pallas_src>

<mosaic_0001>
module attributes {stable_mosaic.version = 11 : i64} {
  func.func @_emotion_kernel(%arg0: i32, %arg1: i32, %arg2: memref<64x256xf32, #tpu.memory_space<vmem>>, %arg3: memref<256x128xbf16, #tpu.memory_space<vmem>>, %arg4: memref<1x128xf32, #tpu.memory_space<vmem>>, %arg5: memref<1x128xf32, #tpu.memory_space<vmem>>, %arg6: memref<128x128xbf16, #tpu.memory_space<vmem>>, %arg7: memref<1x128xf32, #tpu.memory_space<vmem>>, %arg8: memref<64x128xbf16, #tpu.memory_space<vmem>>, %arg9: memref<1x128xf32, #tpu.memory_space<vmem>>, %arg10: memref<1x128xf32, #tpu.memory_space<vmem>>, %arg11: memref<1x128xf32, #tpu.memory_space<vmem>>, %arg12: memref<1x128xf32, #tpu.memory_space<vmem>>, %arg13: memref<4x64x128xbf16, #tpu.memory_space<vmem>>) attributes {dimension_semantics = [#tpu.dimension_semantics<arbitrary>, #tpu.dimension_semantics<arbitrary>], iteration_bounds = array<i64: 2, 4>, scalar_prefetch = 0 : i64, scratch_operands = 5 : i64, tpu.core_type = #tpu.core_type<tc>, window_params = [{transform_indices = @transform_0, window_bounds = array<i64: 64, 256>}, {pipeline_mode = #tpu.pipeline_mode<synchronous>, transform_indices = @transform_1, window_bounds = array<i64: 256, 128>}, {pipeline_mode = #tpu.pipeline_mode<synchronous>, transform_indices = @transform_2, window_bounds = array<i64: 1, 128>}, {pipeline_mode = #tpu.pipeline_mode<synchronous>, transform_indices = @transform_3, window_bounds = array<i64: 1, 128>}, {pipeline_mode = #tpu.pipeline_mode<synchronous>, transform_indices = @transform_4, window_bounds = array<i64: 128, 128>}, {pipeline_mode = #tpu.pipeline_mode<synchronous>, transform_indices = @transform_5, window_bounds = array<i64: 1, 128>}, {transform_indices = @transform_6, window_bounds = array<i64: 64, 128>}]} {
    %c0_i32 = arith.constant 0 : i32
    %0 = arith.cmpi eq, %arg0, %c0_i32 : i32
    %1 = arith.extui %0 : i1 to i32
    %c0_i32_0 = arith.constant 0 : i32
    %2 = arith.cmpi ne, %1, %c0_i32_0 : i32
    scf.if %2 {
      %c0_i32_2 = arith.constant 0 : i32
      %6 = arith.cmpi eq, %arg1, %c0_i32_2 : i32
      %7 = arith.extui %6 : i1 to i32
      %c0_i32_3 = arith.constant 0 : i32
      %8 = arith.cmpi ne, %7, %c0_i32_3 : i32
      scf.if %8 {
        %cst_12 = arith.constant 0.000000e+00 : f32
        %24 = vector.broadcast %cst_12 : f32 to vector<1x128xf32>
        %c0_13 = arith.constant 0 : index
        %c0_14 = arith.constant 0 : index
        %25 = vector.load %arg9[%c0_13, %c0_14] : memref<1x128xf32, #tpu.memory_space<vmem>>, vector<1x128xf32>
        tpu.vector_store %arg9[%c0_13, %c0_14], %24 {strides = array<i32>} : memref<1x128xf32, #tpu.memory_space<vmem>>, vector<1x128xf32>,
        %cst_15 = arith.constant 0.000000e+00 : f32
        %26 = vector.broadcast %cst_15 : f32 to vector<1x128xf32>
        %c0_16 = arith.constant 0 : index
        %c0_17 = arith.constant 0 : index
        %27 = vector.load %arg10[%c0_16, %c0_17] : memref<1x128xf32, #tpu.memory_space<vmem>>, vector<1x128xf32>
        tpu.vector_store %arg10[%c0_16, %c0_17], %26 {strides = array<i32>} : memref<1x128xf32, #tpu.memory_space<vmem>>, vector<1x128xf32>,
        %cst_18 = arith.constant 0.000000e+00 : bf16
        %28 = vector.broadcast %cst_18 : bf16 to vector<64x128xbf16>
        %c0_19 = arith.constant 0 : index
        %c0_20 = arith.constant 0 : index
        %29 = vector.load %arg8[%c0_19, %c0_20] : memref<64x128xbf16, #tpu.memory_space<vmem>>, vector<64x128xbf16>
        tpu.vector_store %arg8[%c0_19, %c0_20], %28 {strides = array<i32>} : memref<64x128xbf16, #tpu.memory_space<vmem>>, vector<64x128xbf16>,
      } else {
      }
      %c0 = arith.constant 0 : index
      %c0_4 = arith.constant 0 : index
      %9 = vector.load %arg2[%c0, %c0_4] : memref<64x256xf32, #tpu.memory_space<vmem>>, vector<64x256xf32>
      %10 = arith.truncf %9 : vector<64x256xf32> to vector<64x256xbf16>
      %c0_5 = arith.constant 0 : index
      %c0_6 = arith.constant 0 : index
      %11 = vector.load %arg3[%c0_5, %c0_6] : memref<256x128xbf16, #tpu.memory_space<vmem>>, vector<256x128xbf16>
      %cst = arith.constant dense<0.000000e+00> : vector<64x128xf32>
      %12 = tpu.matmul %10, %11, %cst {dimension_numbers = #tpu.dot_dimension_numbers<[1], [0], [0], [1], [0, 0, 1, 1], [], []>} : vector<64x256xbf16>, vector<256x128xbf16>, vector<64x128xf32> -> vector<64x128xf32>
      %13 = arith.truncf %12 : vector<64x128xf32> to vector<64x128xbf16>
      %14 = arith.index_cast %arg1 : i32 to index
      %c0_7 = arith.constant 0 : index
      %c0_8 = arith.constant 0 : index
      %15 = vector.load %arg13[%14, %c0_7, %c0_8] : memref<4x64x128xbf16, #tpu.memory_space<vmem>>, vector<1x64x128xbf16>
      %16 = vector.shape_cast %15 : vector<1x64x128xbf16> to vector<64x128xbf16>
      %17 = vector.shape_cast %13 : vector<64x128xbf16> to vector<1x64x128xbf16>
      tpu.vector_store %arg13[%14, %c0_7, %c0_8], %17 {strides = array<i32>} : memref<4x64x128xbf16, #tpu.memory_space<vmem>>, vector<1x64x128xbf16>,
      %c3_i32 = arith.constant 3 : i32
      %18 = arith.cmpi slt, %arg1, %c3_i32 : i32
      %19 = arith.extui %18 : i1 to i32
      %c0_i32_9 = arith.constant 0 : i32
      %20 = arith.cmpi ne, %19, %c0_i32_9 : i32
      scf.if %20 {
        %c0_12 = arith.constant 0 : index
        %c0_13 = arith.constant 0 : index
        %24 = vector.load %arg9[%c0_12, %c0_13] : memref<1x128xf32, #tpu.memory_space<vmem>>, vector<1x128xf32>
        %cst_14 = arith.constant dense<0.000000e+00> : vector<128xf32>
        %25 = vector.multi_reduction <add>, %12, %cst_14 [0] : vector<64x128xf32> to vector<128xf32>
        %26 = vector.shape_cast %25 : vector<128xf32> to vector<1x128xf32>
        %27 = arith.addf %24, %26 : vector<1x128xf32>
        %c0_15 = arith.constant 0 : index
        %c0_16 = arith.constant 0 : index
        %28 = vector.load %arg9[%c0_15, %c0_16] : memref<1x128xf32, #tpu.memory_space<vmem>>, vector<1x128xf32>
        tpu.vector_store %arg9[%c0_15, %c0_16], %27 {strides = array<i32>} : memref<1x128xf32, #tpu.memory_space<vmem>>, vector<1x128xf32>,
        %c0_17 = arith.constant 0 : index
        %c0_18 = arith.constant 0 : index
        %29 = vector.load %arg10[%c0_17, %c0_18] : memref<1x128xf32, #tpu.memory_space<vmem>>, vector<1x128xf32>
        %30 = arith.mulf %12, %12 : vector<64x128xf32>
        %cst_19 = arith.constant dense<0.000000e+00> : vector<128xf32>
        %31 = vector.multi_reduction <add>, %30, %cst_19 [0] : vector<64x128xf32> to vector<128xf32>
        %32 = vector.shape_cast %31 : vector<128xf32> to vector<1x128xf32>
        %33 = arith.addf %29, %32 : vector<1x128xf32>
        %c0_20 = arith.constant 0 : index
        %c0_21 = arith.constant 0 : index
        %34 = vector.load %arg10[%c0_20, %c0_21] : memref<1x128xf32, #tpu.memory_space<vmem>>, vector<1x128xf32>
        tpu.vector_store %arg10[%c0_20, %c0_21], %33 {strides = array<i32>} : memref<1x128xf32, #tpu.memory_space<vmem>>, vector<1x128xf32>,
      } else {
      }
      %c3_i32_10 = arith.constant 3 : i32
      %21 = arith.cmpi eq, %arg1, %c3_i32_10 : i32
      %22 = arith.extui %21 : i1 to i32
      %c0_i32_11 = arith.constant 0 : i32
      %23 = arith.cmpi ne, %22, %c0_i32_11 : i32
      scf.if %23 {
        %24 = tpu.iota {dimensions = array<i32: 0>} : vector<64x1xi32>
        %c64_i32 = arith.constant 64 : i32
        %25 = arith.muli %arg1, %c64_i32 : i32
        %26 = vector.broadcast %25 : i32 to vector<64x1xi32>
        %27 = arith.addi %24, %26 : vector<64x1xi32>
        %c200_i32 = arith.constant 200 : i32
        %28 = vector.broadcast %c200_i32 : i32 to vector<64x1xi32>
        %29 = arith.cmpi slt, %27, %28 : vector<64x1xi32>
        %cst_12 = arith.constant 0.000000e+00 : f32
        %30 = vector.shape_cast %29 : vector<64x1xi1> to vector<64x1xi1>
        %31 = vector.broadcast %30 : vector<64x1xi1> to vector<64x128xi1>
        %32 = vector.broadcast %cst_12 : f32 to vector<64x128xf32>
        %33 = arith.select %31, %12, %32 : vector<64x128xi1>, vector<64x128xf32>
        %c0_13 = arith.constant 0 : index
        %c0_14 = arith.constant 0 : index
        %34 = vector.load %arg9[%c0_13, %c0_14] : memref<1x128xf32, #tpu.memory_space<vmem>>, vector<1x128xf32>
        %cst_15 = arith.constant dense<0.000000e+00> : vector<128xf32>
        %35 = vector.multi_reduction <add>, %33, %cst_15 [0] : vector<64x128xf32> to vector<128xf32>
        %36 = vector.shape_cast %35 : vector<128xf32> to vector<1x128xf32>
        %37 = arith.addf %34, %36 : vector<1x128xf32>
        %c0_16 = arith.constant 0 : index
        %c0_17 = arith.constant 0 : index
        %38 = vector.load %arg9[%c0_16, %c0_17] : memref<1x128xf32, #tpu.memory_space<vmem>>, vector<1x128xf32>
        tpu.vector_store %arg9[%c0_16, %c0_17], %37 {strides = array<i32>} : memref<1x128xf32, #tpu.memory_space<vmem>>, vector<1x128xf32>,
        %c0_18 = arith.constant 0 : index
        %c0_19 = arith.constant 0 : index
        %39 = vector.load %arg10[%c0_18, %c0_19] : memref<1x128xf32, #tpu.memory_space<vmem>>, vector<1x128xf32>
        %40 = arith.mulf %33, %33 : vector<64x128xf32>
        %cst_20 = arith.constant dense<0.000000e+00> : vector<128xf32>
        %41 = vector.multi_reduction <add>, %40, %cst_20 [0] : vector<64x128xf32> to vector<128xf32>
        %42 = vector.shape_cast %41 : vector<128xf32> to vector<1x128xf32>
        %43 = arith.addf %39, %42 : vector<1x128xf32>
        %c0_21 = arith.constant 0 : index
        %c0_22 = arith.constant 0 : index
        %44 = vector.load %arg10[%c0_21, %c0_22] : memref<1x128xf32, #tpu.memory_space<vmem>>, vector<1x128xf32>
        tpu.vector_store %arg10[%c0_21, %c0_22], %43 {strides = array<i32>} : memref<1x128xf32, #tpu.memory_space<vmem>>, vector<1x128xf32>,
        %c0_23 = arith.constant 0 : index
        %c0_24 = arith.constant 0 : index
        %45 = vector.load %arg9[%c0_23, %c0_24] : memref<1x128xf32, #tpu.memory_space<vmem>>, vector<1x128xf32>
        %cst_25 = arith.constant 5.000000e-03 : f32
        %46 = vector.broadcast %cst_25 : f32 to vector<1x128xf32>
        %47 = arith.mulf %45, %46 : vector<1x128xf32>
        %c0_26 = arith.constant 0 : index
        %c0_27 = arith.constant 0 : index
        %48 = vector.load %arg10[%c0_26, %c0_27] : memref<1x128xf32, #tpu.memory_space<vmem>>, vector<1x128xf32>
        %cst_28 = arith.constant 5.000000e-03 : f32
        %49 = vector.broadcast %cst_28 : f32 to vector<1x128xf32>
        %50 = arith.mulf %48, %49 : vector<1x128xf32>
        %51 = arith.mulf %47, %47 : vector<1x128xf32>
        %52 = arith.subf %50, %51 : vector<1x128xf32>
        %cst_29 = arith.constant 0.000000e+00 : f32
        %53 = vector.broadcast %cst_29 : f32 to vector<1x128xf32>
        %54 = arith.maximumf %52, %53 : vector<1x128xf32>
        %c0_30 = arith.constant 0 : index
        %c0_31 = arith.constant 0 : index
        %55 = vector.load %arg4[%c0_30, %c0_31] : memref<1x128xf32, #tpu.memory_space<vmem>>, vector<1x128xf32>
        %cst_32 = arith.constant 9.99999974E-6 : f32
        %56 = vector.broadcast %cst_32 : f32 to vector<1x128xf32>
        %57 = arith.addf %54, %56 : vector<1x128xf32>
        %58 = math.rsqrt %57 : vector<1x128xf32>
        %59 = arith.mulf %55, %58 : vector<1x128xf32>
        %c0_33 = arith.constant 0 : index
        %c0_34 = arith.constant 0 : index
        %60 = vector.load %arg11[%c0_33, %c0_34] : memref<1x128xf32, #tpu.memory_space<vmem>>, vector<1x128xf32>
        tpu.vector_store %arg11[%c0_33, %c0_34], %59 {strides = array<i32>} : memref<1x128xf32, #tpu.memory_space<vmem>>, vector<1x128xf32>,
        %c0_35 = arith.constant 0 : index
        %c0_36 = arith.constant 0 : index
        %61 = vector.load %arg5[%c0_35, %c0_36] : memref<1x128xf32, #tpu.memory_space<vmem>>, vector<1x128xf32>
        %62 = arith.mulf %47, %59 : vector<1x128xf32>
        %63 = arith.subf %61, %62 : vector<1x128xf32>
        %c0_37 = arith.constant 0 : index
        %c0_38 = arith.constant 0 : index
        %64 = vector.load %arg12[%c0_37, %c0_38] : memref<1x128xf32, #tpu.memory_space<vmem>>, vector<1x128xf32>
        tpu.vector_store %arg12[%c0_37, %c0_38], %63 {strides = array<i32>} : memref<1x128xf32, #tpu.memory_space<vmem>>, vector<1x128xf32>,
      } else {
      }
    } else {
    }
    %c1_i32 = arith.constant 1 : i32
    %3 = arith.cmpi eq, %arg0, %c1_i32 : i32
    %4 = arith.extui %3 : i1 to i32
    %c0_i32_1 = arith.constant 0 : i32
    %5 = arith.cmpi ne, %4, %c0_i32_1 : i32
    scf.if %5 {
      %6 = arith.index_cast %arg1 : i32 to index
      %c0 = arith.constant 0 : index
      %c0_2 = arith.constant 0 : index
      %7 = vector.load %arg13[%6, %c0, %c0_2] : memref<4x64x128xbf16, #tpu.memory_space<vmem>>, vector<1x64x128xbf16>
      %8 = vector.shape_cast %7 : vector<1x64x128xbf16> to vector<64x128xbf16>
      %9 = arith.extf %8 : vector<64x128xbf16> to vector<64x128xf32>
      %c0_3 = arith.constant 0 : index
      %c0_4 = arith.constant 0 : index
      %10 = vector.load %arg11[%c0_3, %c0_4] : memref<1x128xf32, #tpu.memory_space<vmem>>, vector<1x128xf32>
      %11 = vector.broadcast %10 : vector<1x128xf32> to vector<64x128xf32>
      %12 = arith.mulf %9, %11 : vector<64x128xf32>
      %c0_5 = arith.constant 0 : index
      %c0_6 = arith.constant 0 : index
      %13 = vector.load %arg12[%c0_5, %c0_6] : memref<1x128xf32, #tpu.memory_space<vmem>>, vector<1x128xf32>
      %14 = vector.broadcast %13 : vector<1x128xf32> to vector<64x128xf32>
      %15 = arith.addf %12, %14 : vector<64x128xf32>
      %cst = arith.constant 0.000000e+00 : f32
      %16 = vector.broadcast %cst : f32 to vector<64x128xf32>
      %17 = arith.maximumf %15, %16 : vector<64x128xf32>
      %18 = arith.truncf %17 : vector<64x128xf32> to vector<64x128xbf16>
      %c0_7 = arith.constant 0 : index
      %c0_8 = arith.constant 0 : index
      %19 = vector.load %arg6[%c0_7, %c0_8] : memref<128x128xbf16, #tpu.memory_space<vmem>>, vector<128x128xbf16>
      %cst_9 = arith.constant dense<0.000000e+00> : vector<64x128xf32>
      %20 = tpu.matmul %18, %19, %cst_9 {dimension_numbers = #tpu.dot_dimension_numbers<[1], [0], [0], [1], [0, 0, 1, 1], [], []>} : vector<64x128xbf16>, vector<128x128xbf16>, vector<64x128xf32> -> vector<64x128xf32>
      %c0_10 = arith.constant 0 : index
      %c0_11 = arith.constant 0 : index
      %21 = vector.load %arg7[%c0_10, %c0_11] : memref<1x128xf32, #tpu.memory_space<vmem>>, vector<1x128xf32>
      %22 = vector.broadcast %21 : vector<1x128xf32> to vector<64x128xf32>
      %23 = arith.addf %20, %22 : vector<64x128xf32>
      %cst_12 = arith.constant 0.000000e+00 : f32
      %24 = vector.broadcast %cst_12 : f32 to vector<64x128xf32>
      %25 = arith.maximumf %23, %24 : vector<64x128xf32>
      %26 = arith.truncf %25 : vector<64x128xf32> to vector<64x128xbf16>
      %c0_13 = arith.constant 0 : index
      %c0_14 = arith.constant 0 : index
      %27 = vector.load %arg8[%c0_13, %c0_14] : memref<64x128xbf16, #tpu.memory_space<vmem>>, vector<64x128xbf16>
      tpu.vector_store %arg8[%c0_13, %c0_14], %26 {strides = array<i32>} : memref<64x128xbf16, #tpu.memory_space<vmem>>, vector<64x128xbf16>,
    } else {
    }
    return
  }
  func.func @transform_0(%arg0: i32, %arg1: i32) -> (i32, i32) {
    %c1_i32 = arith.constant 1 : i32
    %0 = arith.subi %c1_i32, %arg0 : i32
    %1 = arith.muli %0, %arg1 : i32
    %c3_i32 = arith.constant 3 : i32
    %2 = arith.muli %arg0, %c3_i32 : i32
    %3 = arith.addi %1, %2 : i32
    %c0_i32 = arith.constant 0 : i32
    %c0_i32_0 = arith.constant 0 : i32
    return %3, %c0_i32 : i32, i32
  }
  func.func @transform_1(%arg0: i32, %arg1: i32) -> (i32, i32) {
    %c0_i32 = arith.constant 0 : i32
    %c0_i32_0 = arith.constant 0 : i32
    %c0_i32_1 = arith.constant 0 : i32
    return %c0_i32, %c0_i32_0 : i32, i32
  }
  func.func @transform_2(%arg0: i32, %arg1: i32) -> (i32, i32) {
    %c0_i32 = arith.constant 0 : i32
    %c0_i32_0 = arith.constant 0 : i32
    %c0_i32_1 = arith.constant 0 : i32
    return %c0_i32, %c0_i32_0 : i32, i32
  }
  func.func @transform_3(%arg0: i32, %arg1: i32) -> (i32, i32) {
    %c0_i32 = arith.constant 0 : i32
    %c0_i32_0 = arith.constant 0 : i32
    %c0_i32_1 = arith.constant 0 : i32
    return %c0_i32, %c0_i32_0 : i32, i32
  }
  func.func @transform_4(%arg0: i32, %arg1: i32) -> (i32, i32) {
    %c0_i32 = arith.constant 0 : i32
    %c0_i32_0 = arith.constant 0 : i32
    %c0_i32_1 = arith.constant 0 : i32
    return %c0_i32, %c0_i32_0 : i32, i32
  }
  func.func @transform_5(%arg0: i32, %arg1: i32) -> (i32, i32) {
    %c0_i32 = arith.constant 0 : i32
    %c0_i32_0 = arith.constant 0 : i32
    %c0_i32_1 = arith.constant 0 : i32
    return %c0_i32, %c0_i32_0 : i32, i32
  }
  func.func @transform_6(%arg0: i32, %arg1: i32) -> (i32, i32) {
    %0 = arith.muli %arg0, %arg1 : i32
    %c0_i32 = arith.constant 0 : i32
    %c0_i32_0 = arith.constant 0 : i32
    return %0, %c0_i32 : i32, i32
  }
}

</mosaic_0001>

<llo_original>
// kernel: tpu_custom_call.1
$region0: #{tpu_custom_call.1}
  #allocation0 [shape = 'u32[]', space=smem, size = 0x4, offset = 0x4, fixed_abs, tag = 'smem constant byte address 0x4 - core index']
  #allocation1 [shape = 'u32[144,128]{1,0:T(1,128)}', space=vmem, size = 0x12000, scoped, tag = 'internal scratch']
  #allocation2 [shape = 'f32[1,128]{1,0:T(1,128)}', space=vmem, size = 0x200, scoped, tag = 'scratch operand']
  #allocation3 [shape = 'f32[1,128]{1,0:T(1,128)}', space=vmem, size = 0x200, scoped, tag = 'scratch operand']
  #allocation4 [shape = 'f32[1,128]{1,0:T(1,128)}', space=vmem, size = 0x200, scoped, tag = 'scratch operand']
  #allocation5 [shape = 'f32[1,128]{1,0:T(1,128)}', space=vmem, size = 0x200, scoped, tag = 'scratch operand']
  #allocation6 [shape = 'bf16[4,64,128]{2,1,0:T(8,128)(2,1)}', space=vmem, size = 0x10000, scoped, tag = 'scratch operand']
  %s0 = inlined_call_operand.hbm [shape: f32[200,256], index: 0, kind: input, shape index: {}]
  %s1 = inlined_call_operand.hbm [shape: bf16[256,128], index: 1, kind: input, shape index: {}]
  %s2 = inlined_call_operand.vmem [shape: f32[1,128], index: 2, kind: input, shape index: {}]
  %s3 = inlined_call_operand.vmem [shape: f32[1,128], index: 3, kind: input, shape index: {}]
  %s4 = inlined_call_operand.hbm [shape: bf16[128,128], index: 4, kind: input, shape index: {}]
  %s5 = inlined_call_operand.vmem [shape: f32[1,128], index: 5, kind: input, shape index: {}]
  %s6 = inlined_call_operand.hbm [shape: bf16[200,128], index: 6, kind: output, shape index: {}]
  %s7 = sld [smem:[#allocation0]]
  $region89: #{tpu_custom_call.1} parent=0
    _
  %s9 = ssub.s32 1, %s7
  %s10 = scalar_select 0, %s9, %s7
  $region1: #{tpu_custom_call.1} parent=0
    #allocation7 [shape = 'u8[131072]{0}', space=vmem, size = 0x20000, scoped, tag = 'input window, operand 0']
    #allocation8 [shape = 's32[2]{0}', space=sflag, size = 0x8, scoped, tag = 'scoped memory for tpu_custom_call.1']
    #allocation9 [shape = 's32[2]{0}', space=sflag, size = 0x8, scoped, tag = 'scoped memory for tpu_custom_call.1']
    #allocation10 [shape = 'u8[65536]{0}', space=vmem, size = 0x10000, scoped, tag = 'input window, operand 1, single buffered']
    #allocation11 [shape = 's32[1]{0}', space=sflag, size = 0x4, scoped, tag = 'scoped memory for tpu_custom_call.1']
    #allocation12 [shape = 'u8[32768]{0}', space=vmem, size = 0x8000, scoped, tag = 'input window, operand 4, single buffered']
    #allocation13 [shape = 'u8[32768]{0}', space=vmem, size = 0x8000, scoped, tag = 'output window, operand 0']
    %11 = vsyncpa [#allocation8], 0
    %s12 = scalar_lea.sflag [#allocation8], 1
    %13 = vsyncpa %s12, 0
    %14 = vsyncpa [#allocation11], 0
    %15 = vsyncpa [#allocation9], 0
    %s16 = scalar_lea.sflag [#allocation9], 1
    %17 = vsyncpa %s16, 0
    loop: start=0, step=1, limit=10
    $region2: #{tpu_custom_call.1} parent=1 // loop_pre_header
      _
    $region3: #{tpu_custom_call.1} parent=1 // loop_header
      %s19 = sphi 0, %s23
      %p20 = scmp.ge.s32.totalorder %s19, 10
      %s26 = sphi 0, %s38
      %s27 = sphi 0, %s34
      %s28 = sphi 0, %s26
      %s29 = sphi 0, %s27
      %s30 = sphi 0, %s28
      %s31 = sphi 0, %s29
      %s49 = sphi 0, %s51
      %s52 = sphi 0, %s49
      %s53 = sphi 0, %s52
      %s69 = sphi 0, %s53
      %s73 = sphi 0, %s73
      %s75 = sphi 0, %s73
      %s76 = sphi 0, %s75
      %s90 = sphi 0, %s76
      %s94 = sphi 0, %s94
      %s96 = sphi 0, %s94
      %s97 = sphi 0, %s96
      %s111 = sphi 0, %s97
      %s115 = sphi 0, %s115
      %s117 = sphi 0, %s115
      %s118 = sphi 0, %s117
      %s132 = sphi 0, %s118
      %s136 = sphi 0, %s136
      %s138 = sphi 0, %s136
      %s139 = sphi 0, %s138
      %s153 = sphi 0, %s139
      %s157 = sphi 0, %s157
      %s159 = sphi 0, %s157
      %s160 = sphi 0, %s159
      %s174 = sphi 0, %s160
      %s182 = sphi 0, %s184
      %s185 = sphi 0, %s182
      %s186 = sphi 0, %s185
      %s202 = sphi 0, %s186
    $region4: #{tpu_custom_call.1} parent=1 // loop_header_branch
      %22 = sbr.rel (%p20) target = $region8
    $region5: #{tpu_custom_call.1} parent=1 // loop_body
      %s24 = ssub.s32 %s19, 1
      %s25 = ssub.s32 %s19, 2
      %s32 = sadd.s32 1, %s27
      %p33 = scmp.ge.s32.totalorder %s32, 4
      %s34 = scalar_select %p33, 0, %s32
      %s35 = sadd.s32 1, %s26
      %s36 = scalar_select %p33, %s35, %s26
      %p37 = scmp.ge.s32.totalorder %s36, 2
      %s38 = scalar_select %p37, 0, %s36
      %s39 = ssub.s32 1, %s26
      %s40 = smul.u32 %s39, %s27
      %s41 = smul.u32 %s26, 3
      %s42 = sadd.s32 %s40, %s41
      %s43 = ssub.s32 1, %s38
      %s44 = smul.u32 %s43, %s34
      %s45 = smul.u32 %s38, 3
      %s46 = sadd.s32 %s44, %s45
      %s47 = ssub.s32 %s42, %s46
      %p48 = scmp.eq.s32.totalorder %s47, 0
      %s50 = sadd.s32 %s49, 1
      %s51 = scalar_select %p48, %s49, %s50
      %p54 = pneg %p48
      %p55 = scmp.eq.s32.totalorder %s19, 7
      %p56 = por %p54, %p55
      %p57 = scmp.ne.s32.totalorder %s49, %s52
      %p58 = scmp.eq.s32.totalorder %s19, 0
      %p59 = por %p57, %p58
      %p60 = scmp.ne.s32.totalorder %s49, %s52
      %p61 = scmp.eq.s32.totalorder %s24, 7
      %p62 = por %p60, %p61
      %p63 = scmp.ne.s32.totalorder %s52, %s53
      %p64 = scmp.eq.s32.totalorder %s24, 0
      %p65 = por %p63, %p64
      %p66 = scmp.ne.s32.totalorder %s52, %s53
      %p67 = scmp.eq.s32.totalorder %s25, 7
      %p68 = por %p66, %p67
      %p70 = scmp.ne.s32.totalorder %s53, %s69
      %p71 = scmp.eq.s32.totalorder %s25, 0
      %p72 = por %p70, %p71
      %s74 = sadd.s32 %s73, 1
      %p77 = scmp.eq.s32.totalorder %s19, 7
      %p78 = scmp.ne.s32.totalorder %s73, %s75
      %p79 = scmp.eq.s32.totalorder %s19, 0
      %p80 = por %p78, %p79
      %p81 = scmp.ne.s32.totalorder %s73, %s75
      %p82 = scmp.eq.s32.totalorder %s24, 7
      %p83 = por %p81, %p82
      %p84 = scmp.ne.s32.totalorder %s75, %s76
      %p85 = scmp.eq.s32.totalorder %s24, 0
      %p86 = por %p84, %p85
      %p87 = scmp.ne.s32.totalorder %s75, %s76
      %p88 = scmp.eq.s32.totalorder %s25, 7
      %p89 = por %p87, %p88
      %p91 = scmp.ne.s32.totalorder %s76, %s90
      %p92 = scmp.eq.s32.totalorder %s25, 0
      %p93 = por %p91, %p92
      %s95 = sadd.s32 %s94, 1
      %p98 = scmp.eq.s32.totalorder %s19, 7
      %p99 = scmp.ne.s32.totalorder %s94, %s96
      %p100 = scmp.eq.s32.totalorder %s19, 0
      %p101 = por %p99, %p100
      %p102 = scmp.ne.s32.totalorder %s94, %s96
      %p103 = scmp.eq.s32.totalorder %s24, 7
      %p104 = por %p102, %p103
      %p105 = scmp.ne.s32.totalorder %s96, %s97
      %p106 = scmp.eq.s32.totalorder %s24, 0
      %p107 = por %p105, %p106
      %p108 = scmp.ne.s32.totalorder %s96, %s97
      %p109 = scmp.eq.s32.totalorder %s25, 7
      %p110 = por %p108, %p109
      %p112 = scmp.ne.s32.totalorder %s97, %s111
      %p113 = scmp.eq.s32.totalorder %s25, 0
      %p114 = por %p112, %p113
      %s116 = sadd.s32 %s115, 1
      %p119 = scmp.eq.s32.totalorder %s19, 7
      %p120 = scmp.ne.s32.totalorder %s115, %s117
      %p121 = scmp.eq.s32.totalorder %s19, 0
      %p122 = por %p120, %p121
      %p123 = scmp.ne.s32.totalorder %s115, %s117
      %p124 = scmp.eq.s32.totalorder %s24, 7
      %p125 = por %p123, %p124
      %p126 = scmp.ne.s32.totalorder %s117, %s118
      %p127 = scmp.eq.s32.totalorder %s24, 0
      %p128 = por %p126, %p127
      %p129 = scmp.ne.s32.totalorder %s117, %s118
      %p130 = scmp.eq.s32.totalorder %s25, 7
      %p131 = por %p129, %p130
      %p133 = scmp.ne.s32.totalorder %s118, %s132
      %p134 = scmp.eq.s32.totalorder %s25, 0
      %p135 = por %p133, %p134
      %s137 = sadd.s32 %s136, 1
      %p140 = scmp.eq.s32.totalorder %s19, 7
      %p141 = scmp.ne.s32.totalorder %s136, %s138
      %p142 = scmp.eq.s32.totalorder %s19, 0
      %p143 = por %p141, %p142
      %p144 = scmp.ne.s32.totalorder %s136, %s138
      %p145 = scmp.eq.s32.totalorder %s24, 7
      %p146 = por %p144, %p145
      %p147 = scmp.ne.s32.totalorder %s138, %s139
      %p148 = scmp.eq.s32.totalorder %s24, 0
      %p149 = por %p147, %p148
      %p150 = scmp.ne.s32.totalorder %s138, %s139
      %p151 = scmp.eq.s32.totalorder %s25, 7
      %p152 = por %p150, %p151
      %p154 = scmp.ne.s32.totalorder %s139, %s153
      %p155 = scmp.eq.s32.totalorder %s25, 0
      %p156 = por %p154, %p155
      %s158 = sadd.s32 %s157, 1
      %p161 = scmp.eq.s32.totalorder %s19, 7
      %p162 = scmp.ne.s32.totalorder %s157, %s159
      %p163 = scmp.eq.s32.totalorder %s19, 0
      %p164 = por %p162, %p163
      %p165 = scmp.ne.s32.totalorder %s157, %s159
      %p166 = scmp.eq.s32.totalorder %s24, 7
      %p167 = por %p165, %p166
      %p168 = scmp.ne.s32.totalorder %s159, %s160
      %p169 = scmp.eq.s32.totalorder %s24, 0
      %p170 = por %p168, %p169
      %p171 = scmp.ne.s32.totalorder %s159, %s160
      %p172 = scmp.eq.s32.totalorder %s25, 7
      %p173 = por %p171, %p172
      %p175 = scmp.ne.s32.totalorder %s160, %s174
      %p176 = scmp.eq.s32.totalorder %s25, 0
      %p177 = por %p175, %p176
      %s178 = smul.u32 %s26, %s27
      %s179 = smul.u32 %s38, %s34
      %s180 = ssub.s32 %s178, %s179
      %p181 = scmp.eq.s32.totalorder %s180, 0
      %s183 = sadd.s32 %s182, 1
      %s184 = scalar_select %p181, %s182, %s183
      %p187 = pneg %p181
      %p188 = scmp.eq.s32.totalorder %s19, 7
      %p189 = por %p187, %p188
      %p190 = scmp.ne.s32.totalorder %s182, %s185
      %p191 = scmp.eq.s32.totalorder %s19, 0
      %p192 = por %p190, %p191
      %p193 = scmp.ne.s32.totalorder %s182, %s185
      %p194 = scmp.eq.s32.totalorder %s24, 7
      %p195 = por %p193, %p194
      %p196 = scmp.ne.s32.totalorder %s185, %s186
      %p197 = scmp.eq.s32.totalorder %s24, 0
      %p198 = por %p196, %p197
      %p199 = scmp.ne.s32.totalorder %s185, %s186
      %p200 = scmp.eq.s32.totalorder %s25, 7
      %p201 = por %p199, %p200
      %p203 = scmp.ne.s32.totalorder %s186, %s202
      %p204 = scmp.eq.s32.totalorder %s25, 0
      %p205 = por %p203, %p204
      %p206 = scmp.le.s32.totalorder 1, %s19
      %p207 = scmp.lt.s32.totalorder %s19, 9
      %p208 = pnand %p206, %p207
      %p209 = pneg %p208
      // Predicated region
      $region9: #{tpu_custom_call.1} parent=5 // pred_check
        _
      $region10: #{tpu_custom_call.1} parent=5 // pred_check_branch
        %211 = sbr.rel (%p208) target = $region12
      $region11: #{tpu_custom_call.1} parent=5 // pred_region
        %s212 = ssub.s32 %s19, 1
        // Predicated region
        $region13: #{tpu_custom_call.1} parent=11 // pred_check
          %p213 = pneg %p86
        $region14: #{tpu_custom_call.1} parent=11 // pred_check_branch
          %215 = sbr.rel (%p213) target = $region16
        $region15: #{tpu_custom_call.1} parent=11 // pred_region
          %s217 = ssub.s32 2048, 2048
          %218 = vsyncadd [#allocation11], %s217
          %s219 = sshll.u32 [#allocation10], 4
          %s220 = int_to_ptr.vmem [resolvable:$true] %s219
          %225 = dma.hbm_to_vmem [thread:$0]  %s1, 2048, %s220, [#allocation11], 64, 64, 4
        $region16: #{tpu_custom_call.1} parent=11 // pred_fallthru
          _
        // Predicated region
        $region17: #{tpu_custom_call.1} parent=11 // pred_check
          %p226 = pneg %p107
        $region18: #{tpu_custom_call.1} parent=11 // pred_check_branch
          %228 = sbr.rel (%p226) target = $region20
        $region19: #{tpu_custom_call.1} parent=11 // pred_region
          _
        $region20: #{tpu_custom_call.1} parent=11 // pred_fallthru
          _
        // Predicated region
        $region21: #{tpu_custom_call.1} parent=11 // pred_check
          %p229 = pneg %p128
        $region22: #{tpu_custom_call.1} parent=11 // pred_check_branch
          %231 = sbr.rel (%p229) target = $region24
        $region23: #{tpu_custom_call.1} parent=11 // pred_region
          _
        $region24: #{tpu_custom_call.1} parent=11 // pred_fallthru
          _
        // Predicated region
        $region25: #{tpu_custom_call.1} parent=11 // pred_check
          %p232 = pneg %p149
        $region26: #{tpu_custom_call.1} parent=11 // pred_check_branch
          %234 = sbr.rel (%p232) target = $region28
        $region27: #{tpu_custom_call.1} parent=11 // pred_region
          %s236 = ssub.s32 1024, 1024
          %237 = vsyncadd [#allocation11], %s236
          %s238 = sshll.u32 [#allocation12], 4
          %s239 = int_to_ptr.vmem [resolvable:$true] %s238
          %244 = dma.hbm_to_vmem [thread:$0]  %s4, 1024, %s239, [#allocation11], 64, 64, 4
        $region28: #{tpu_custom_call.1} parent=11 // pred_fallthru
          _
        // Predicated region
        $region29: #{tpu_custom_call.1} parent=11 // pred_check
          %p245 = pneg %p170
        $region30: #{tpu_custom_call.1} parent=11 // pred_check_branch
          %247 = sbr.rel (%p245) target = $region32
        $region31: #{tpu_custom_call.1} parent=11 // pred_region
          _
        $region32: #{tpu_custom_call.1} parent=11 // pred_fallthru
          _
      $region12: #{tpu_custom_call.1} parent=5 // pred_fallthru
        _
      %p248 = scmp.lt.s32.totalorder %s19, 8
      // Predicated region
      $region33: #{tpu_custom_call.1} parent=5 // pred_check
        %p249 = pneg %p248
      $region34: #{tpu_custom_call.1} parent=5 // pred_check_branch
        %251 = sbr.rel (%p249) target = $region36
      $region35: #{tpu_custom_call.1} parent=5 // pred_region
        // Predicated region
        $region37: #{tpu_custom_call.1} parent=35 // pred_check
          %p252 = pneg %p59
        $region38: #{tpu_custom_call.1} parent=35 // pred_check_branch
          %254 = sbr.rel (%p252) target = $region40
        $region39: #{tpu_custom_call.1} parent=35 // pred_region
          %s255 = sand.u32 %s49, 1
          %s256 = scalar_lea.sflag [#allocation8], %s255
          %s257 = sand.u32 %s49, 1
          %s258 = smul.addr %s257, 128
          %s259 = scalar_lea.vmem [#allocation7], %s258
          %s260 = ssub.s32 1, %s26
          %s261 = smul.u32 %s260, %s27
          %s262 = smul.u32 %s26, 3
          %s263 = sadd.s32 %s261, %s262
          %s264 = smul.u32 8, %s263
          %s265 = ssub.s32 25, %s264
          %p266 = scmp.lt.s32.totalorder %s265, 8
          %s267 = scalar_select %p266, %s265, 8
          %s268 = smul.u32 128, %s267
          %s269 = smul.u32 %s268, 2
          %s271 = ssub.s32 2048, %s269
          %272 = vsyncadd %s256, %s271
          %p273 = scmp.ne.s32.totalorder 0, %s269
          %s274 = smul.addr %s264, 2
          %s275 = smul.addr %s274, 128
          %s276 = scalar_lea.hbm %s0, %s275
          %s277 = smul.u32 16, %s267
          %s278 = sshll.u32 %s259, 4
          %s279 = int_to_ptr.vmem [resolvable:$true] %s278
          %s280 = sshll.u32 %s277, 4
          %284 = dma.hbm_to_vmem [thread:$0]  (%p273), %s276, %s280, %s279, %s256, 256, 256, 16
        $region40: #{tpu_custom_call.1} parent=35 // pred_fallthru
          _
      $region36: #{tpu_custom_call.1} parent=5 // pred_fallthru
        _
      %p285 = scmp.le.s32.totalorder 1, %s19
      %p286 = scmp.lt.s32.totalorder %s19, 9
      %p287 = pnand %p285, %p286
      %p288 = pneg %p287
      // Predicated region
      $region41: #{tpu_custom_call.1} parent=5 // pred_check
        _
      $region42: #{tpu_custom_call.1} parent=5 // pred_check_branch
        %290 = sbr.rel (%p287) target = $region44
      $region43: #{tpu_custom_call.1} parent=5 // pred_region
        %s291 = ssub.s32 %s19, 1
        %s292 = sand.u32 %s52, 1
        %s293 = scalar_lea.sflag [#allocation8], %s292
        %s294 = sand.u32 %s52, 1
        %s295 = smul.addr %s294, 128
        %s296 = scalar_lea.vmem [#allocation7], %s295
        // Predicated region
        $region45: #{tpu_custom_call.1} parent=43 // pred_check
          %p297 = pneg %p65
        $region46: #{tpu_custom_call.1} parent=43 // pred_check_branch
          %299 = sbr.rel (%p297) target = $region48
        $region47: #{tpu_custom_call.1} parent=43 // pred_region
          %300 = dma.done %s293, 2048
        $region48: #{tpu_custom_call.1} parent=43 // pred_fallthru
          _
        // Predicated region
        $region49: #{tpu_custom_call.1} parent=43 // pred_check
          %p301 = pneg %p86
        $region50: #{tpu_custom_call.1} parent=43 // pred_check_branch
          %303 = sbr.rel (%p301) target = $region52
        $region51: #{tpu_custom_call.1} parent=43 // pred_region
          %304 = dma.done [#allocation11], 2048
        $region52: #{tpu_custom_call.1} parent=43 // pred_fallthru
          _
        // Predicated region
        $region53: #{tpu_custom_call.1} parent=43 // pred_check
          %p305 = pneg %p149
        $region54: #{tpu_custom_call.1} parent=43 // pred_check_branch
          %307 = sbr.rel (%p305) target = $region56
        $region55: #{tpu_custom_call.1} parent=43 // pred_region
          %308 = dma.done [#allocation11], 1024
        $region56: #{tpu_custom_call.1} parent=43 // pred_fallthru
          _
        %s309 = sand.u32 %s52, 1
        %s310 = scalar_lea.sflag [#allocation8], %s309
        %s311 = sand.u32 %s52, 1
        %s312 = smul.addr %s311, 128
        %s313 = scalar_lea.vmem [#allocation7], %s312
        %p314 = pneg %p65
        %p315 = pneg %p62
        %p316 = pneg %p86
        %p317 = pneg %p83
        %p318 = pneg %p107
        %p319 = pneg %p104
        %p320 = pneg %p128
        %p321 = pneg %p125
        %p322 = pneg %p149
        %p323 = pneg %p146
        %p324 = pneg %p170
        %p325 = pneg %p167
        %p326 = pneg %p198
        %p327 = pneg %p195
        %s328 = sand.u32 %s185, 1
        %s329 = scalar_lea.sflag [#allocation9], %s328
        %s330 = sand.u32 %s185, 1
        %s331 = smul.addr %s330, 32
        %s332 = scalar_lea.vmem [#allocation13], %s331
        %s333 = ssub.s32 1, %s28
        %s334 = smul.u32 %s333, %s29
        %s335 = smul.u32 %s28, 3
        %s336 = sadd.s32 %s334, %s335
        %s337 = smul.u32 8, %s336
        %s338 = ssub.s32 25, %s337
        %p339 = scmp.lt.s32.totalorder %s338, 8
        %s340 = scalar_select %p339, %s338, 8
        %s341 = smul.u32 128, %s340
        %s342 = smul.u32 %s341, 2
        %s343 = smul.u32 %s28, %s29
        %s344 = smul.u32 8, %s343
        %s345 = ssub.s32 25, %s344
        %p346 = scmp.lt.s32.totalorder %s345, 8
        %s347 = scalar_select %p346, %s345, 8
        %s348 = smul.u32 64, %s347
        %p350 = scmp.eq.s32.totalorder %s28, 0
        // Predicated region
        $region57: #{tpu_custom_call.1} parent=43 // pred_check
          %p351 = pneg %p350
        $region58: #{tpu_custom_call.1} parent=43 // pred_check_branch
          %353 = sbr.rel (%p351) target = $region60
        $region59: #{tpu_custom_call.1} parent=43 // pred_region
          %p354 = scmp.eq.s32.totalorder %s29, 0
          // Predicated region
          $region61: #{tpu_custom_call.1} parent=59 // pred_check
            %p355 = pneg %p354
          $region62: #{tpu_custom_call.1} parent=59 // pred_check_branch
            %357 = sbr.rel (%p355) target = $region64
          $region63: #{tpu_custom_call.1} parent=59 // pred_region
            %358 = vst [vmem:[#allocation2] sm:$0x1] 0.0
            %359 = vst [vmem:[#allocation3] sm:$0x1] 0.0
            %360 = vst [vmem:[%s332] sm:$0xf] 0
            %361 = vst [vmem:[%s332 + $0x4] sm:$0xf] 0
            %362 = vst [vmem:[%s332 + $0x8] sm:$0xf] 0
            %363 = vst [vmem:[%s332 + $0xc] sm:$0xf] 0
            %364 = vst [vmem:[%s332 + $0x10] sm:$0xf] 0
            %365 = vst [vmem:[%s332 + $0x14] sm:$0xf] 0
            %366 = vst [vmem:[%s332 + $0x18] sm:$0xf] 0
            %367 = vst [vmem:[%s332 + $0x1c] sm:$0xf] 0
          $region64: #{tpu_custom_call.1} parent=59 // pred_fallthru
            _
          %v368 = vld [vmem:[%s296] sm:$0xff]
          %v369 = vld [vmem:[%s296 + $0x8] sm:$0xff]
          %v370 = vld [vmem:[%s296 + $0x10] sm:$0xff]
          %v371 = vld [vmem:[%s296 + $0x18] sm:$0xff]
          %v372 = vld [vmem:[%s296 + $0x20] sm:$0xff]
          %v373 = vld [vmem:[%s296 + $0x28] sm:$0xff]
          %v374 = vld [vmem:[%s296 + $0x30] sm:$0xff]
          %v375 = vld [vmem:[%s296 + $0x38] sm:$0xff]
          %v376 = vld [vmem:[%s296 + $0x40] sm:$0xff]
          %v377 = vld [vmem:[%s296 + $0x48] sm:$0xff]
          %v378 = vld [vmem:[%s296 + $0x50] sm:$0xff]
          %v379 = vld [vmem:[%s296 + $0x58] sm:$0xff]
          %v380 = vld [vmem:[%s296 + $0x60] sm:$0xff]
          %v381 = vld [vmem:[%s296 + $0x68] sm:$0xff]
          %v382 = vld [vmem:[%s296 + $0x70] sm:$0xff]
          %v383 = vld [vmem:[%s296 + $0x78] sm:$0xff]
          %v384 = vpack.c.bf16 %v370, %v368
          %v385 = vpack.c.bf16 %v371, %v369
          %v386 = vpack.c.bf16 %v374, %v372
          %v387 = vpack.c.bf16 %v375, %v373
          %v388 = vpack.c.bf16 %v378, %v376
          %v389 = vpack.c.bf16 %v379, %v377
          %v390 = vpack.c.bf16 %v382, %v380
          %v391 = vpack.c.bf16 %v383, %v381
          %v392 = vld [vmem:[#allocation10] sm:$0xf]
          %v393 = vld [vmem:[#allocation10 + $0x4] sm:$0xf]
          %v394 = vld [vmem:[#allocation10 + $0x8] sm:$0xf]
          %v395 = vld [vmem:[#allocation10 + $0xc] sm:$0xf]
          %v396 = vld [vmem:[#allocation10 + $0x10] sm:$0xf]
          %v397 = vld [vmem:[#allocation10 + $0x14] sm:$0xf]
          %v398 = vld [vmem:[#allocation10 + $0x18] sm:$0xf]
          %v399 = vld [vmem:[#allocation10 + $0x1c] sm:$0xf]
          %v400 = vld [vmem:[#allocation10 + $0x20] sm:$0xf]
          %v401 = vld [vmem:[#allocation10 + $0x24] sm:$0xf]
          %v402 = vld [vmem:[#allocation10 + $0x28] sm:$0xf]
          %v403 = vld [vmem:[#allocation10 + $0x2c] sm:$0xf]
          %v404 = vld [vmem:[#allocation10 + $0x30] sm:$0xf]
          %v405 = vld [vmem:[#allocation10 + $0x34] sm:$0xf]
          %v406 = vld [vmem:[#allocation10 + $0x38] sm:$0xf]
          %v407 = vld [vmem:[#allocation10 + $0x3c] sm:$0xf]
          %v408 = vld [vmem:[#allocation10 + $0x40] sm:$0xf]
          %v409 = vld [vmem:[#allocation10 + $0x44] sm:$0xf]
          %v410 = vld [vmem:[#allocation10 + $0x48] sm:$0xf]
          %v411 = vld [vmem:[#allocation10 + $0x4c] sm:$0xf]
          %v412 = vld [vmem:[#allocation10 + $0x50] sm:$0xf]
          %v413 = vld [vmem:[#allocation10 + $0x54] sm:$0xf]
          %v414 = vld [vmem:[#allocation10 + $0x58] sm:$0xf]
          %v415 = vld [vmem:[#allocation10 + $0x5c] sm:$0xf]
          %v416 = vld [vmem:[#allocation10 + $0x60] sm:$0xf]
          %v417 = vld [vmem:[#allocation10 + $0x64] sm:$0xf]
          %v418 = vld [vmem:[#allocation10 + $0x68] sm:$0xf]
          %v419 = vld [vmem:[#allocation10 + $0x6c] sm:$0xf]
          %v420 = vld [vmem:[#allocation10 + $0x70] sm:$0xf]
          %v421 = vld [vmem:[#allocation10 + $0x74] sm:$0xf]
          %v422 = vld [vmem:[#allocation10 + $0x78] sm:$0xf]
          %v423 = vld [vmem:[#allocation10 + $0x7c] sm:$0xf]
          %v456 = vunpack.c.l.b16 %v392
          %v457 = vunpack.c.l.b16 %v393
          %v458 = vunpack.c.l.b16 %v394
          %v459 = vunpack.c.l.b16 %v395
          %v460 = vunpack.c.l.b16 %v396
          %v461 = vunpack.c.l.b16 %v397
          %v462 = vunpack.c.l.b16 %v398
          %v463 = vunpack.c.l.b16 %v399
          %v464 = vunpack.c.l.b16 %v400
          %v465 = vunpack.c.l.b16 %v401
          %v466 = vunpack.c.l.b16 %v402
          %v467 = vunpack.c.l.b16 %v403
          %v468 = vunpack.c.l.b16 %v404
          %v469 = vunpack.c.l.b16 %v405
          %v470 = vunpack.c.l.b16 %v406
          %v471 = vunpack.c.l.b16 %v407
          %v472 = vunpack.c.l.b16 %v408
          %v473 = vunpack.c.l.b16 %v409
          %v474 = vunpack.c.l.b16 %v410
          %v475 = vunpack.c.l.b16 %v411
          %v476 = vunpack.c.l.b16 %v412
          %v477 = vunpack.c.l.b16 %v413
          %v478 = vunpack.c.l.b16 %v414
          %v479 = vunpack.c.l.b16 %v415
          %v480 = vunpack.c.l.b16 %v416
          %v481 = vunpack.c.l.b16 %v417
          %v482 = vunpack.c.l.b16 %v418
          %v483 = vunpack.c.l.b16 %v419
          %v484 = vunpack.c.l.b16 %v420
          %v485 = vunpack.c.l.b16 %v421
          %v486 = vunpack.c.l.b16 %v422
          %v487 = vunpack.c.l.b16 %v423
          %v488 = vpack.c.b16 %v457, %v456
          %v489 = vpack.c.b16 %v459, %v458
          %v490 = vpack.c.b16 %v461, %v460
          %v491 = vpack.c.b16 %v463, %v462
          %v492 = vpack.c.b16 %v465, %v464
          %v493 = vpack.c.b16 %v467, %v466
          %v494 = vpack.c.b16 %v469, %v468
          %v495 = vpack.c.b16 %v471, %v470
          %v496 = vpack.c.b16 %v473, %v472
          %v497 = vpack.c.b16 %v475, %v474
          %v498 = vpack.c.b16 %v477, %v476
          %v499 = vpack.c.b16 %v479, %v478
          %v500 = vpack.c.b16 %v481, %v480
          %v501 = vpack.c.b16 %v483, %v482
          %v502 = vpack.c.b16 %v485, %v484
          %v503 = vpack.c.b16 %v487, %v486
          %520 = vmatprep.subr.bf16.mxu0 0
          %521 = vmatpush1.bf16.msra.mxu0 %v495
          %522 = vmatprep.subr.bf16.mxu0 0
          %523 = vmatpush1.bf16.msra.mxu0 %v494
          %524 = vmatprep.subr.bf16.mxu0 0
          %525 = vmatpush1.bf16.msra.mxu0 %v493
          %526 = vmatprep.subr.bf16.mxu0 0
          %527 = vmatpush1.bf16.msra.mxu0 %v492
          %528 = vmatprep.subr.bf16.mxu0 0
          %529 = vmatpush1.bf16.msra.mxu0 %v491
          %530 = vmatprep.subr.bf16.mxu0 0
          %531 = vmatpush1.bf16.msra.mxu0 %v490
          %532 = vmatprep.subr.bf16.mxu0 0
          %533 = vmatpush1.bf16.msra.mxu0 %v489
          %534 = vmatprep.subr.bf16.mxu0 0
          %535 = vmatpush1.bf16.msra.mxu0 %v488
          %536 = vmatprep.subr.bf16.mxu0 0
          %537 = vmatpush2.bf16.msra.mxu0 %v503
          %538 = vmatprep.subr.bf16.mxu0 0
          %539 = vmatpush2.bf16.msra.mxu0 %v502
          %540 = vmatprep.subr.bf16.mxu0 0
          %541 = vmatpush2.bf16.msra.mxu0 %v501
          %542 = vmatprep.subr.bf16.mxu0 0
          %543 = vmatpush2.bf16.msra.mxu0 %v500
          %544 = vmatprep.subr.bf16.mxu0 0
          %545 = vmatpush2.bf16.msra.mxu0 %v499
          %546 = vmatprep.subr.bf16.mxu0 0
          %547 = vmatpush2.bf16.msra.mxu0 %v498
          %548 = vmatprep.subr.bf16.mxu0 0
          %549 = vmatpush2.bf16.msra.mxu0 %v497
          %550 = vmatprep.subr.bf16.mxu0 0
          %551 = vmatpush2.bf16.msra.mxu0 %v496
          %552 = vmatprep.mubr.bf16.mxu0 %v385
          %553 = vmatmul.mubr.bf16.gmra.mxu0 %v384
          %v554 = vpop.f32.mrf.mxu0
          %v555 = vadd.f32 0.0, %v554
          %v556 = vpop.f32.mrf.mxu0
          %v557 = vpop.f32.mrf.mxu0
          %v558 = vadd.f32 0.0, %v557
          %v559 = vpop.f32.mrf.mxu0
          %560 = vmatprep.mubr.bf16.mxu0 %v387
          %561 = vmatmul.mubr.bf16.gmra.mxu0 %v386
          %v562 = vpop.f32.mrf.mxu0
          %v563 = vadd.f32 0.0, %v562
          %v564 = vpop.f32.mrf.mxu0
          %v565 = vpop.f32.mrf.mxu0
          %v566 = vadd.f32 0.0, %v565
          %v567 = vpop.f32.mrf.mxu0
          %568 = vmatprep.mubr.bf16.mxu0 %v389
          %569 = vmatmul.mubr.bf16.gmra.mxu0 %v388
          %v570 = vpop.f32.mrf.mxu0
          %v571 = vadd.f32 0.0, %v570
          %v572 = vpop.f32.mrf.mxu0
          %v573 = vpop.f32.mrf.mxu0
          %v574 = vadd.f32 0.0, %v573
          %v575 = vpop.f32.mrf.mxu0
          %576 = vmatprep.mubr.bf16.mxu0 %v391
          %577 = vmatmul.mubr.bf16.gmra.mxu0 %v390
          %v578 = vpop.f32.mrf.mxu0
          %v579 = vadd.f32 0.0, %v578
          %v580 = vpop.f32.mrf.mxu0
          %v581 = vpop.f32.mrf.mxu0
          %v582 = vadd.f32 0.0, %v581
          %v583 = vpop.f32.mrf.mxu0
          %584 = vdwg.mxu0
          %v585 = vpack.c.bf16 %v558, %v555
          %v586 = vpack.c.bf16 %v566, %v563
          %v587 = vpack.c.bf16 %v574, %v571
          %v588 = vpack.c.bf16 %v582, %v579
          %v593 = vunpack.c.l.b16 %v585
          %v594 = vunpack.c.h.b16 %v585
          %v595 = vunpack.c.l.b16 %v586
          %v596 = vunpack.c.h.b16 %v586
          %v597 = vunpack.c.l.b16 %v587
          %v598 = vunpack.c.h.b16 %v587
          %v599 = vunpack.c.l.b16 %v588
          %v600 = vunpack.c.h.b16 %v588
          %v601 = vpack.c.b16 %v593, %v593
          %v602 = vpack.c.b16 %v594, %v594
          %v603 = vpack.c.b16 %v595, %v595
          %v604 = vpack.c.b16 %v596, %v596
          %v605 = vpack.c.b16 %v597, %v597
          %v606 = vpack.c.b16 %v598, %v598
          %v607 = vpack.c.b16 %v599, %v599
          %v608 = vpack.c.b16 %v600, %v600
          %s617 = smul.u32 %s29, 8
          %s618 = smul.addr %s617, 4
          %s619 = scalar_lea.vmem [#allocation6], %s618
          %620 = vst [vmem:[%s619] sm:$0xf] %v601
          %621 = vst [vmem:[%s619 + $0x4] sm:$0xf] %v602
          %622 = vst [vmem:[%s619 + $0x8] sm:$0xf] %v603
          %623 = vst [vmem:[%s619 + $0xc] sm:$0xf] %v604
          %624 = vst [vmem:[%s619 + $0x10] sm:$0xf] %v605
          %625 = vst [vmem:[%s619 + $0x14] sm:$0xf] %v606
          %626 = vst [vmem:[%s619 + $0x18] sm:$0xf] %v607
          %627 = vst [vmem:[%s619 + $0x1c] sm:$0xf] %v608
          %p628 = scmp.lt.s32.totalorder %s29, 3
          // Predicated region
          $region65: #{tpu_custom_call.1} parent=59 // pred_check
            %p629 = pneg %p628
          $region66: #{tpu_custom_call.1} parent=59 // pred_check_branch
            %631 = sbr.rel (%p629) target = $region68
          $region67: #{tpu_custom_call.1} parent=59 // pred_region
            %v632 = vld [vmem:[#allocation2] sm:$0x1]
            %v633 = vadd.f32 %v555, %v558
            %v634 = vadd.f32 %v633, %v563
            %v635 = vadd.f32 %v634, %v566
            %v636 = vadd.f32 %v635, %v571
            %v637 = vadd.f32 %v636, %v574
            %v638 = vadd.f32 %v637, %v579
            %v639 = vadd.f32 %v638, %v582
            %v640 = vrot.slane %v639, 4
            %v641 = vadd.f32 %v639, %v640
            %v642 = vrot.slane %v641, 2
            %v643 = vadd.f32 %v641, %v642
            %v644 = vrot.slane %v643, 1
            %v645 = vadd.f32 %v643, %v644
            %v646 = vadd.f32 %v632, %v645
            %647 = vst [vmem:[#allocation2] sm:$0x1] %v646
            %v648 = vld [vmem:[#allocation3] sm:$0x1]
            %v649 = vmul.f32 %v555, %v555
            %v650 = vmul.f32 %v558, %v558
            %v651 = vmul.f32 %v563, %v563
            %v652 = vmul.f32 %v566, %v566
            %v653 = vmul.f32 %v571, %v571
            %v654 = vmul.f32 %v574, %v574
            %v655 = vmul.f32 %v579, %v579
            %v656 = vmul.f32 %v582, %v582
            %v657 = vadd.f32 %v649, %v650
            %v658 = vadd.f32 %v657, %v651
            %v659 = vadd.f32 %v658, %v652
            %v660 = vadd.f32 %v659, %v653
            %v661 = vadd.f32 %v660, %v654
            %v662 = vadd.f32 %v661, %v655
            %v663 = vadd.f32 %v662, %v656
            %v664 = vrot.slane %v663, 4
            %v665 = vadd.f32 %v663, %v664
            %v666 = vrot.slane %v665, 2
            %v667 = vadd.f32 %v665, %v666
            %v668 = vrot.slane %v667, 1
            %v669 = vadd.f32 %v667, %v668
            %v670 = vadd.f32 %v648, %v669
            %671 = vst [vmem:[#allocation3] sm:$0x1] %v670
          $region68: #{tpu_custom_call.1} parent=59 // pred_fallthru
            _
          %p672 = scmp.eq.s32.totalorder %s29, 3
          // Predicated region
          $region69: #{tpu_custom_call.1} parent=59 // pred_check
            %p673 = pneg %p672
          $region70: #{tpu_custom_call.1} parent=59 // pred_check_branch
            %675 = sbr.rel (%p673) target = $region72
          $region71: #{tpu_custom_call.1} parent=59 // pred_region
            %v676 = vlaneseq
            %v677 = vshrl.u32 %v676, 7
            %v678 = vadd.s32 %v677, 8
            %v679 = vadd.s32 %v677, 16
            %v680 = vadd.s32 %v677, 24
            %v681 = vadd.s32 %v677, 32
            %v682 = vadd.s32 %v677, 40
            %v683 = vadd.s32 %v677, 48
            %v684 = vadd.s32 %v677, 56
            %s685 = smul.u32 %s29, 64
            %v686 = vstv %s685
            %v687 = vadd.s32 %v677, %v686
            %v688 = vadd.s32 %v678, %v686
            %v689 = vadd.s32 %v679, %v686
            %v690 = vadd.s32 %v680, %v686
            %v691 = vadd.s32 %v681, %v686
            %v692 = vadd.s32 %v682, %v686
            %v693 = vadd.s32 %v683, %v686
            %v694 = vadd.s32 %v684, %v686
            %vm695 = vcmp.lt.s32.totalorder %v687, 200
            %vm696 = vcmp.lt.s32.totalorder %v688, 200
            %vm697 = vcmp.lt.s32.totalorder %v689, 200
            %vm698 = vcmp.lt.s32.totalorder %v690, 200
            %vm699 = vcmp.lt.s32.totalorder %v691, 200
            %vm700 = vcmp.lt.s32.totalorder %v692, 200
            %vm701 = vcmp.lt.s32.totalorder %v693, 200
            %vm702 = vcmp.lt.s32.totalorder %v694, 200
            %v703 = vsel %vm695, 1, 0
            %v704 = vsel %vm696, 1, 0
            %v705 = vsel %vm697, 1, 0
            %v706 = vsel %vm698, 1, 0
            %v707 = vsel %vm699, 1, 0
            %v708 = vsel %vm700, 1, 0
            %v709 = vsel %vm701, 1, 0
            %v710 = vsel %vm702, 1, 0
            %vm711 = vcmp.eq.s32.totalorder %v703, 1
            %vm712 = vcmp.eq.s32.totalorder %v704, 1
            %vm713 = vcmp.eq.s32.totalorder %v705, 1
            %vm714 = vcmp.eq.s32.totalorder %v706, 1
            %vm715 = vcmp.eq.s32.totalorder %v707, 1
            %vm716 = vcmp.eq.s32.totalorder %v708, 1
            %vm717 = vcmp.eq.s32.totalorder %v709, 1
            %vm718 = vcmp.eq.s32.totalorder %v710, 1
            %v719 = vsel %vm711, %v555, 0.0
            %v720 = vsel %vm712, %v558, 0.0
            %v721 = vsel %vm713, %v563, 0.0
            %v722 = vsel %vm714, %v566, 0.0
            %v723 = vsel %vm715, %v571, 0.0
            %v724 = vsel %vm716, %v574, 0.0
            %v725 = vsel %vm717, %v579, 0.0
            %v726 = vsel %vm718, %v582, 0.0
            %v727 = vld [vmem:[#allocation2] sm:$0x1]
            %v728 = vadd.f32 %v719, %v720
            %v729 = vadd.f32 %v728, %v721
            %v730 = vadd.f32 %v729, %v722
            %v731 = vadd.f32 %v730, %v723
            %v732 = vadd.f32 %v731, %v724
            %v733 = vadd.f32 %v732, %v725
            %v734 = vadd.f32 %v733, %v726
            %v735 = vrot.slane %v734, 4
            %v736 = vadd.f32 %v734, %v735
            %v737 = vrot.slane %v736, 2
            %v738 = vadd.f32 %v736, %v737
            %v739 = vrot.slane %v738, 1
            %v740 = vadd.f32 %v738, %v739
            %v741 = vadd.f32 %v727, %v740
            %742 = vst [vmem:[#allocation2] sm:$0x1] %v741
            %v743 = vld [vmem:[#allocation3] sm:$0x1]
            %v744 = vmul.f32 %v719, %v719
            %v745 = vmul.f32 %v720, %v720
            %v746 = vmul.f32 %v721, %v721
            %v747 = vmul.f32 %v722, %v722
            %v748 = vmul.f32 %v723, %v723
            %v749 = vmul.f32 %v724, %v724
            %v750 = vmul.f32 %v725, %v725
            %v751 = vmul.f32 %v726, %v726
            %v752 = vadd.f32 %v744, %v745
            %v753 = vadd.f32 %v752, %v746
            %v754 = vadd.f32 %v753, %v747
            %v755 = vadd.f32 %v754, %v748
            %v756 = vadd.f32 %v755, %v749
            %v757 = vadd.f32 %v756, %v750
            %v758 = vadd.f32 %v757, %v751
            %v759 = vrot.slane %v758, 4
            %v760 = vadd.f32 %v758, %v759
            %v761 = vrot.slane %v760, 2
            %v762 = vadd.f32 %v760, %v761
            %v763 = vrot.slane %v762, 1
            %v764 = vadd.f32 %v762, %v763
            %v765 = vadd.f32 %v743, %v764
            %766 = vst [vmem:[#allocation3] sm:$0x1] %v765
            %v767 = vld [vmem:[#allocation2] sm:$0x1]
            %v768 = vmul.f32 %v767, 0.005
            %v769 = vld [vmem:[#allocation3] sm:$0x1]
            %v770 = vmul.f32 %v769, 0.005
            %v771 = vmul.f32 %v768, %v768
            %v772 = vsub.f32 %v770, %v771
            %v773 = vmax.f32 %v772, 0.0
            %v774 = vld [vmem:[%s2] sm:$0x1]
            %v775 = vadd.f32 %v773, 1e-05
            %v776 = vrsqrt.pop %v775
            %v777 = vmul.f32 %v774, %v776
            %778 = vst [vmem:[#allocation4] sm:$0x1] %v777
            %v779 = vld [vmem:[%s3] sm:$0x1]
            %v780 = vmul.f32 %v768, %v777
            %v781 = vsub.f32 %v779, %v780
            %782 = vst [vmem:[#allocation5] sm:$0x1] %v781
          $region72: #{tpu_custom_call.1} parent=59 // pred_fallthru
            _
        $region60: #{tpu_custom_call.1} parent=43 // pred_fallthru
          _
        %p783 = scmp.eq.s32.totalorder %s28, 1
        // Predicated region
        $region73: #{tpu_custom_call.1} parent=43 // pred_check
          %p784 = pneg %p783
        $region74: #{tpu_custom_call.1} parent=43 // pred_check_branch
          %786 = sbr.rel (%p784) target = $region76
        $region75: #{tpu_custom_call.1} parent=43 // pred_region
          %s787 = smul.u32 %s29, 8
          %s788 = smul.addr %s787, 4
          %s789 = scalar_lea.vmem [#allocation6], %s788
          %v790 = vld [vmem:[%s789] sm:$0xf]
          %v791 = vld [vmem:[%s789 + $0x4] sm:$0xf]
          %v792 = vld [vmem:[%s789 + $0x8] sm:$0xf]
          %v793 = vld [vmem:[%s789 + $0xc] sm:$0xf]
          %v794 = vld [vmem:[%s789 + $0x10] sm:$0xf]
          %v795 = vld [vmem:[%s789 + $0x14] sm:$0xf]
          %v796 = vld [vmem:[%s789 + $0x18] sm:$0xf]
          %v797 = vld [vmem:[%s789 + $0x1c] sm:$0xf]
          %v798 = vunpack.c.l.bf16 %v790
          %v799 = vunpack.c.l.bf16 %v791
          %v800 = vunpack.c.l.bf16 %v792
          %v801 = vunpack.c.l.bf16 %v793
          %v802 = vunpack.c.l.bf16 %v794
          %v803 = vunpack.c.l.bf16 %v795
          %v804 = vunpack.c.l.bf16 %v796
          %v805 = vunpack.c.l.bf16 %v797
          %v806 = vld [vmem:[#allocation4] sm:$0x1]
          %v808 = vlaneseq
          %v809 = vshrl.u32 %v808, 7
          %v810 = vsub.s32 0, %v809
          %v811 = vrot.slane %v806, %v810
          %v813 = vmul.f32 %v798, %v811
          %v814 = vmul.f32 %v799, %v811
          %v815 = vmul.f32 %v800, %v811
          %v816 = vmul.f32 %v801, %v811
          %v817 = vmul.f32 %v802, %v811
          %v818 = vmul.f32 %v803, %v811
          %v819 = vmul.f32 %v804, %v811
          %v820 = vmul.f32 %v805, %v811
          %v821 = vld [vmem:[#allocation5] sm:$0x1]
          %v823 = vlaneseq
          %v824 = vshrl.u32 %v823, 7
          %v825 = vsub.s32 0, %v824
          %v826 = vrot.slane %v821, %v825
          %v828 = vadd.f32 %v813, %v826
          %v829 = vadd.f32 %v814, %v826
          %v830 = vadd.f32 %v815, %v826
          %v831 = vadd.f32 %v816, %v826
          %v832 = vadd.f32 %v817, %v826
          %v833 = vadd.f32 %v818, %v826
          %v834 = vadd.f32 %v819, %v826
          %v835 = vadd.f32 %v820, %v826
          %v836 = vmax.f32 %v828, 0.0
          %v837 = vmax.f32 %v829, 0.0
          %v838 = vmax.f32 %v830, 0.0
          %v839 = vmax.f32 %v831, 0.0
          %v840 = vmax.f32 %v832, 0.0
          %v841 = vmax.f32 %v833, 0.0
          %v842 = vmax.f32 %v834, 0.0
          %v843 = vmax.f32 %v835, 0.0
          %v844 = vpack.c.bf16 %v837, %v836
          %v845 = vpack.c.bf16 %v839, %v838
          %v846 = vpack.c.bf16 %v841, %v840
          %v847 = vpack.c.bf16 %v843, %v842
          %v848 = vld [vmem:[#allocation12] sm:$0xf]
          %v849 = vld [vmem:[#allocation12 + $0x4] sm:$0xf]
          %v850 = vld [vmem:[#allocation12 + $0x8] sm:$0xf]
          %v851 = vld [vmem:[#allocation12 + $0xc] sm:$0xf]
          %v852 = vld [vmem:[#allocation12 + $0x10] sm:$0xf]
          %v853 = vld [vmem:[#allocation12 + $0x14] sm:$0xf]
          %v854 = vld [vmem:[#allocation12 + $0x18] sm:$0xf]
          %v855 = vld [vmem:[#allocation12 + $0x1c] sm:$0xf]
          %v856 = vld [vmem:[#allocation12 + $0x20] sm:$0xf]
          %v857 = vld [vmem:[#allocation12 + $0x24] sm:$0xf]
          %v858 = vld [vmem:[#allocation12 + $0x28] sm:$0xf]
          %v859 = vld [vmem:[#allocation12 + $0x2c] sm:$0xf]
          %v860 = vld [vmem:[#allocation12 + $0x30] sm:$0xf]
          %v861 = vld [vmem:[#allocation12 + $0x34] sm:$0xf]
          %v862 = vld [vmem:[#allocation12 + $0x38] sm:$0xf]
          %v863 = vld [vmem:[#allocation12 + $0x3c] sm:$0xf]
          %v864 = vld [vmem:[%s5] sm:$0x1]
          %v866 = vlaneseq
          %v867 = vshrl.u32 %v866, 7
          %v868 = vsub.s32 0, %v867
          %v869 = vrot.slane %v864, %v868
          %v887 = vunpack.c.l.b16 %v848
          %v888 = vunpack.c.l.b16 %v849
          %v889 = vunpack.c.l.b16 %v850
          %v890 = vunpack.c.l.b16 %v851
          %v891 = vunpack.c.l.b16 %v852
          %v892 = vunpack.c.l.b16 %v853
          %v893 = vunpack.c.l.b16 %v854
          %v894 = vunpack.c.l.b16 %v855
          %v895 = vunpack.c.l.b16 %v856
          %v896 = vunpack.c.l.b16 %v857
          %v897 = vunpack.c.l.b16 %v858
          %v898 = vunpack.c.l.b16 %v859
          %v899 = vunpack.c.l.b16 %v860
          %v900 = vunpack.c.l.b16 %v861
          %v901 = vunpack.c.l.b16 %v862
          %v902 = vunpack.c.l.b16 %v863
          %v903 = vpack.c.b16 %v888, %v887
          %v904 = vpack.c.b16 %v890, %v889
          %v905 = vpack.c.b16 %v892, %v891
          %v906 = vpack.c.b16 %v894, %v893
          %v907 = vpack.c.b16 %v896, %v895
          %v908 = vpack.c.b16 %v898, %v897
          %v909 = vpack.c.b16 %v900, %v899
          %v910 = vpack.c.b16 %v902, %v901
          %919 = vmatprep.subr.bf16.mxu0 0
          %920 = vmatpush1.bf16.msra.mxu0 %v910
          %921 = vmatprep.subr.bf16.mxu0 0
          %922 = vmatpush1.bf16.msra.mxu0 %v909
          %923 = vmatprep.subr.bf16.mxu0 0
          %924 = vmatpush1.bf16.msra.mxu0 %v908
          %925 = vmatprep.subr.bf16.mxu0 0
          %926 = vmatpush1.bf16.msra.mxu0 %v907
          %927 = vmatprep.subr.bf16.mxu0 0
          %928 = vmatpush1.bf16.msra.mxu0 %v906
          %929 = vmatprep.subr.bf16.mxu0 0
          %930 = vmatpush1.bf16.msra.mxu0 %v905
          %931 = vmatprep.subr.bf16.mxu0 0
          %932 = vmatpush1.bf16.msra.mxu0 %v904
          %933 = vmatprep.subr.bf16.mxu0 0
          %934 = vmatpush1.bf16.msra.mxu0 %v903
          %935 = vmatprep.subr.bf16.mxu0 0
          %936 = vmatpush2.bf16.msra.mxu0 0
          %937 = vmatprep.subr.bf16.mxu0 0
          %938 = vmatpush2.bf16.msra.mxu0 0
          %939 = vmatprep.subr.bf16.mxu0 0
          %940 = vmatpush2.bf16.msra.mxu0 0
          %941 = vmatprep.subr.bf16.mxu0 0
          %942 = vmatpush2.bf16.msra.mxu0 0
          %943 = vmatprep.subr.bf16.mxu0 0
          %944 = vmatpush2.bf16.msra.mxu0 0
          %945 = vmatprep.subr.bf16.mxu0 0
          %946 = vmatpush2.bf16.msra.mxu0 0
          %947 = vmatprep.subr.bf16.mxu0 0
          %948 = vmatpush2.bf16.msra.mxu0 0
          %949 = vmatprep.subr.bf16.mxu0 0
          %950 = vmatpush2.bf16.msra.mxu0 0
          %951 = vmatprep.mubr.bf16.mxu0 0
          %952 = vmatmul.mubr.bf16.gmra.mxu0 %v844
          %v953 = vpop.f32.mrf.mxu0
          %v954 = vadd.f32 %v869, %v953
          %v955 = vpop.f32.mrf.mxu0
          %v956 = vpop.f32.mrf.mxu0
          %v957 = vadd.f32 %v869, %v956
          %v958 = vpop.f32.mrf.mxu0
          %959 = vmatprep.mubr.bf16.mxu0 0
          %960 = vmatmul.mubr.bf16.gmra.mxu0 %v845
          %v961 = vpop.f32.mrf.mxu0
          %v962 = vadd.f32 %v869, %v961
          %v963 = vpop.f32.mrf.mxu0
          %v964 = vpop.f32.mrf.mxu0
          %v965 = vadd.f32 %v869, %v964
          %v966 = vpop.f32.mrf.mxu0
          %967 = vmatprep.mubr.bf16.mxu0 0
          %968 = vmatmul.mubr.bf16.gmra.mxu0 %v846
          %v969 = vpop.f32.mrf.mxu0
          %v970 = vadd.f32 %v869, %v969
          %v971 = vpop.f32.mrf.mxu0
          %v972 = vpop.f32.mrf.mxu0
          %v973 = vadd.f32 %v869, %v972
          %v974 = vpop.f32.mrf.mxu0
          %975 = vmatprep.mubr.bf16.mxu0 0
          %976 = vmatmul.mubr.bf16.gmra.mxu0 %v847
          %v977 = vpop.f32.mrf.mxu0
          %v978 = vadd.f32 %v869, %v977
          %v979 = vpop.f32.mrf.mxu0
          %v980 = vpop.f32.mrf.mxu0
          %v981 = vadd.f32 %v869, %v980
          %v982 = vpop.f32.mrf.mxu0
          %983 = vdwg.mxu0
          %v984 = vmax.f32 %v954, 0.0
          %v985 = vmax.f32 %v957, 0.0
          %v986 = vmax.f32 %v962, 0.0
          %v987 = vmax.f32 %v965, 0.0
          %v988 = vmax.f32 %v970, 0.0
          %v989 = vmax.f32 %v973, 0.0
          %v990 = vmax.f32 %v978, 0.0
          %v991 = vmax.f32 %v981, 0.0
          %v992 = vpack.c.bf16 %v985, %v984
          %v993 = vpack.c.bf16 %v987, %v986
          %v994 = vpack.c.bf16 %v989, %v988
          %v995 = vpack.c.bf16 %v991, %v990
          %v1000 = vunpack.c.l.b16 %v992
          %v1001 = vunpack.c.h.b16 %v992
          %v1002 = vunpack.c.l.b16 %v993
          %v1003 = vunpack.c.h.b16 %v993
          %v1004 = vunpack.c.l.b16 %v994
          %v1005 = vunpack.c.h.b16 %v994
          %v1006 = vunpack.c.l.b16 %v995
          %v1007 = vunpack.c.h.b16 %v995
          %v1008 = vpack.c.b16 %v1000, %v1000
          %v1009 = vpack.c.b16 %v1001, %v1001
          %v1010 = vpack.c.b16 %v1002, %v1002
          %v1011 = vpack.c.b16 %v1003, %v1003
          %v1012 = vpack.c.b16 %v1004, %v1004
          %v1013 = vpack.c.b16 %v1005, %v1005
          %v1014 = vpack.c.b16 %v1006, %v1006
          %v1015 = vpack.c.b16 %v1007, %v1007
          %1024 = vst [vmem:[%s332] sm:$0xf] %v1008
          %1025 = vst [vmem:[%s332 + $0x4] sm:$0xf] %v1009
          %1026 = vst [vmem:[%s332 + $0x8] sm:$0xf] %v1010
          %1027 = vst [vmem:[%s332 + $0xc] sm:$0xf] %v1011
          %1028 = vst [vmem:[%s332 + $0x10] sm:$0xf] %v1012
          %1029 = vst [vmem:[%s332 + $0x14] sm:$0xf] %v1013
          %1030 = vst [vmem:[%s332 + $0x18] sm:$0xf] %v1014
          %1031 = vst [vmem:[%s332 + $0x1c] sm:$0xf] %v1015
        $region76: #{tpu_custom_call.1} parent=43 // pred_fallthru
          _
        %s1032 = sand.u32 %s185, 1
        %s1033 = scalar_lea.sflag [#allocation9], %s1032
        %s1034 = sand.u32 %s185, 1
        %s1035 = smul.addr %s1034, 32
        %s1036 = scalar_lea.vmem [#allocation13], %s1035
        // Predicated region
        $region77: #{tpu_custom_call.1} parent=43 // pred_check
          %p1037 = pneg %p195
        $region78: #{tpu_custom_call.1} parent=43 // pred_check_branch
          %1039 = sbr.rel (%p1037) target = $region80
        $region79: #{tpu_custom_call.1} parent=43 // pred_region
          %s1040 = smul.u32 %s28, %s29
          %s1041 = smul.u32 8, %s1040
          %s1042 = ssub.s32 25, %s1041
          %p1043 = scmp.lt.s32.totalorder %s1042, 8
          %s1044 = scalar_select %p1043, %s1042, 8
          %s1045 = smul.u32 64, %s1044
          %s1047 = ssub.s32 512, %s1045
          %1048 = vsyncadd %s1033, %s1047
          %p1049 = scmp.ne.s32.totalorder 0, %s1045
          %s1050 = smul.addr %s1041, 64
          %s1051 = scalar_lea.hbm %s6, %s1050
          %s1052 = smul.u32 4, %s1044
          %s1053 = sshll.u32 %s1036, 4
          %s1054 = int_to_ptr.vmem [resolvable:$true] %s1053
          %s1055 = sshll.u32 %s1052, 4
          %1059 = dma.vmem_to_hbm [thread:$0]  (%p1049), %s1054, %s1055, %s1051, %s1033, 64, 64, 4
        $region80: #{tpu_custom_call.1} parent=43 // pred_fallthru
          _
      $region44: #{tpu_custom_call.1} parent=5 // pred_fallthru
        _
      %p1060 = scmp.le.s32.totalorder 2, %s19
      // Predicated region
      $region81: #{tpu_custom_call.1} parent=5 // pred_check
        %p1061 = pneg %p1060
      $region82: #{tpu_custom_call.1} parent=5 // pred_check_branch
        %1063 = sbr.rel (%p1061) target = $region84
      $region83: #{tpu_custom_call.1} parent=5 // pred_region
        %s1064 = ssub.s32 %s19, 2
        // Predicated region
        $region85: #{tpu_custom_call.1} parent=83 // pred_check
          %p1065 = pneg %p201
        $region86: #{tpu_custom_call.1} parent=83 // pred_check_branch
          %1067 = sbr.rel (%p1065) target = $region88
        $region87: #{tpu_custom_call.1} parent=83 // pred_region
          %s1068 = sand.u32 %s186, 1
          %s1069 = scalar_lea.sflag [#allocation9], %s1068
          %s1070 = sand.u32 %s186, 1
          %s1071 = smul.addr %s1070, 32
          %s1072 = scalar_lea.vmem [#allocation13], %s1071
          %1073 = dma.done %s1069, 512
        $region88: #{tpu_custom_call.1} parent=83 // pred_fallthru
          _
      $region84: #{tpu_custom_call.1} parent=5 // pred_fallthru
        _
    $region6: #{tpu_custom_call.1} parent=1 // loop_footer
      %s23 = sadd.s32 1, %s19
    $region7: #{tpu_custom_call.1} parent=1 // loop_footer_branch
      %18 = sbr.rel target = $region3
    $region8: #{tpu_custom_call.1} parent=1 // loop_exit
      _
    %1074 = vsyncpa [#allocation8], 1
    %s1075 = scalar_lea.sflag [#allocation8], 1
    %1076 = vsyncpa %s1075, 1
    %1077 = vsyncpa [#allocation11], 1
    %1078 = vsyncpa [#allocation9], 1
    %s1079 = scalar_lea.sflag [#allocation9], 1
    %1080 = vsyncpa %s1079, 1

</llo_original>
